<compile_context>
chip_gen: v7x
topology: tpu7x:2x2x1
jax: 0.10.0
libtpu: 0.0.40
codegen_flags: <defaults>
</compile_context>

<pallas_src>
import functools
import numpy as np
import jax
import jax.numpy as jnp
from jax import lax
from jax.experimental import pallas as pl
from jax.experimental.pallas import tpu as pltpu


def _round_up(n, m):
    return (n + m - 1) // m * m


# ---------------------------------------------------------------------------
# Capability probe: single-buffered resident blocks via pipeline_mode
# ---------------------------------------------------------------------------
@functools.lru_cache(maxsize=None)
def _buffered_supported():
    """True if BlockSpec(pipeline_mode=pl.Buffered(1)) compiles on this JAX."""
    try:
        def _probe(x_ref, o_ref):
            o_ref[...] = x_ref[...]

        f = pl.pallas_call(
            _probe,
            out_shape=jax.ShapeDtypeStruct((8, 128), jnp.float32),
            grid=(1,),
            in_specs=[pl.BlockSpec((8, 128), lambda i: (0, 0),
                                   pipeline_mode=pl.Buffered(1))],
            out_specs=pl.BlockSpec((8, 128), lambda i: (0, 0)),
        )
        jax.block_until_ready(f(jnp.zeros((8, 128), jnp.float32)))
        return True
    except Exception:
        return False


def _resident_spec(shape, index_map):
    """BlockSpec for a constant-index (resident) block; single-buffered when
    the installed JAX supports pipeline_mode (saves VMEM, esp. on v7x)."""
    if _buffered_supported():
        return pl.BlockSpec(shape, index_map, pipeline_mode=pl.Buffered(1))
    return pl.BlockSpec(shape, index_map)


# ---------------------------------------------------------------------------
# Fused dense stack kernel (bnn1..4 + LSTM input proj, and nn1..nn8)
# ---------------------------------------------------------------------------
def _fused_mlp_kernel(*refs, relu_flags):
    x_ref, *wb_refs, o_ref = refs
    h = x_ref[...]                                   # f32 activations
    for i, relu in enumerate(relu_flags):
        w = wb_refs[2 * i][...]                      # bf16 resident weight
        b = wb_refs[2 * i + 1][...]                  # f32 bias
        h = jnp.dot(h.astype(jnp.bfloat16), w,
                    preferred_element_type=jnp.float32) + b
        if relu:
            h = jnp.maximum(h, 0.0)
    o_ref[...] = h.astype(o_ref.dtype)


def fused_mlp(x, layers, *, tile=512):
    """Fused stack of Linear(+optional ReLU) layers.

    x: (N, K) f32.  layers: list of (w:(K_i, M_i) f32, b:(1, M_i) f32, relu).
    Weights are cast to bf16 (MXU-native) and kept resident (single-buffered
    when supported); the grid tiles only the row dimension.
    """
    n, k = x.shape
    out_dim = layers[-1][0].shape[1]
    tm = tile if n >= tile else _round_up(max(n, 1), 8)
    n_pad = _round_up(n, tm)
    if n_pad != n:
        x = jnp.pad(x, ((0, n_pad - n), (0, 0)))

    relu_flags = tuple(bool(r) for _, _, r in layers)
    wb = []
    in_specs = [pl.BlockSpec((tm, k), lambda i: (i, 0))]
    for w, b, _ in layers:
        wb += [w.astype(jnp.bfloat16), b.astype(jnp.float32)]
        in_specs += [_resident_spec(w.shape, lambda i: (0, 0)),
                     _resident_spec(b.shape, lambda i: (0, 0))]

    out = pl.pallas_call(
        functools.partial(_fused_mlp_kernel, relu_flags=relu_flags),
        out_shape=jax.ShapeDtypeStruct((n_pad, out_dim), jnp.float32),
        grid_spec=pltpu.PrefetchScalarGridSpec(
            num_scalar_prefetch=0,
            grid=(n_pad // tm,),
            in_specs=in_specs,
            out_specs=pl.BlockSpec((tm, out_dim), lambda i: (i, 0)),
        ),
        compiler_params=pltpu.CompilerParams(
            dimension_semantics=("parallel",),
            vmem_limit_bytes=32 * 1024 * 1024),
    )(x, *wb)
    return out[:n]


# ---------------------------------------------------------------------------
# Bidirectional LSTM recurrence: grid = (direction, time-chunk)
# ---------------------------------------------------------------------------
def _bilstm_kernel(xw_ref, lens_ref, whh_ref, out_ref, h_ref, c_ref):
    # xw_ref : (TC, B, 4H) f32  — precomputed x@Wih^T + b chunk (fwd time order)
    # lens_ref: (B, 1) int32    — per-sequence lengths (0 for padded rows)
    # whh_ref: (H, 4H) bf16     — recurrent weight for this direction
    # out_ref: (TC, B, H) f32   — this direction's half of the (T,B,2H) output
    # h_ref/c_ref: (B, H) f32 scratch carries persisting across chunks.
    TC = xw_ref.shape[0]
    H = whh_ref.shape[0]
    is_bwd = pl.program_id(0) == 1
    c_idx = pl.program_id(1)
    nT = pl.num_programs(1)

    @pl.when(c_idx == 0)
    def _():
        h_ref[...] = jnp.zeros_like(h_ref)
        c_ref[...] = jnp.zeros_like(c_ref)

    lens = lens_ref[...]                    # (B, 1) int32
    whh = whh_ref[...]                      # (H, 4H) bf16, hoisted
    # Backward direction visits chunk blocks in reverse (see index_map); the
    # global time base of this chunk follows the same arithmetic.
    base = jnp.where(is_bwd, nT - 1 - c_idx, c_idx) * TC

    def step(s, carry):
        # Backward walks time in reverse; masked (padded) steps keep the state
        # frozen at zero -> packed-sequence semantics.
        t_loc = jnp.where(is_bwd, TC - 1 - s, s)
        t_glob = base + t_loc
        gates = xw_ref[t_loc] + jnp.dot(
            h_ref[...].astype(jnp.bfloat16), whh,
            preferred_element_type=jnp.float32)
        i_g = jax.nn.sigmoid(gates[:, 0 * H:1 * H])
        f_g = jax.nn.sigmoid(gates[:, 1 * H:2 * H])
        g_g = jnp.tanh(gates[:, 2 * H:3 * H])
        o_g = jax.nn.sigmoid(gates[:, 3 * H:4 * H])
        c_new = f_g * c_ref[...] + i_g * g_g
        h_new = o_g * jnp.tanh(c_new)

        mask = t_glob < lens                                  # (B,1) bool
        c_ref[...] = jnp.where(mask, c_new, c_ref[...])
        h_ref[...] = jnp.where(mask, h_new, h_ref[...])
        out_ref[t_loc] = jnp.where(mask, h_new, 0.0).astype(out_ref.dtype)
        return carry

    lax.fori_loop(0, TC, step, 0, unroll=2)


def bilstm(xw, lens, whh_bf16, time_chunk):
    """xw: (2, T_pad, B, 4H) f32; lens: (B,1) int32; whh: (2, H, 4H) bf16.
    Returns (T_pad, B, 2H) f32 with [..., :H] = forward, [..., H:] = backward."""
    _, t_pad, b, g = xw.shape
    h = g // 4
    n_chunks = t_pad // time_chunk

    def _blk(d, c):
        # forward: chunks in increasing order; backward: decreasing order.
        return c + d * (n_chunks - 1 - 2 * c)

    return pl.pallas_call(
        _bilstm_kernel,
        out_shape=jax.ShapeDtypeStruct((t_pad, b, 2 * h), jnp.float32),
        grid_spec=pltpu.PrefetchScalarGridSpec(
            num_scalar_prefetch=0,
            grid=(2, n_chunks),                      # (direction, time chunk)
            in_specs=[
                pl.BlockSpec((None, time_chunk, b, g),
                             lambda d, c: (d, _blk(d, c), 0, 0)),
                _resident_spec((b, 1), lambda d, c: (0, 0)),
                pl.BlockSpec((None, h, g), lambda d, c: (d, 0, 0)),
            ],
            out_specs=pl.BlockSpec((time_chunk, b, h),
                                   lambda d, c: (_blk(d, c), 0, d)),
            scratch_shapes=[pltpu.VMEM((b, h), jnp.float32),   # h carry
                            pltpu.VMEM((b, h), jnp.float32)],  # c carry
        ),
        compiler_params=pltpu.CompilerParams(
            dimension_semantics=("parallel", "arbitrary"),  # v7x: 1 TC per dir
            vmem_limit_bytes=32 * 1024 * 1024),
    )(xw, lens, whh_bf16)


# ---------------------------------------------------------------------------
# Model wrapper (glue in plain JAX)
# ---------------------------------------------------------------------------
def rnn_forward(x, lengths, params):
    B, S, F = x.shape
    wih_f, whh_f, b_f = params["lstm_fwd"]
    wih_b, whh_b, b_b = params["lstm_bwd"]
    H = whh_f.shape[0]

    # Transpose the *narrow* (F=28) input to time-major so the wide 8H
    # projection output never needs a (B,T)->(T,B) transpose.
    x_tm = jnp.transpose(x, (1, 0, 2)).astype(jnp.float32)        # (S, B, F)

    # Fused bnn1..bnn4 (+ReLU) + LSTM input projections for both directions.
    layers = [(w, b, True) for (w, b) in params["bnn"]]
    layers.append((jnp.concatenate([wih_f, wih_b], axis=1),
                   jnp.concatenate([b_f, b_b], axis=1), False))
    xw = fused_mlp(x_tm.reshape(S * B, F), layers)                # (S*B, 8H)

    # pack_padded_sequence / pad_packed_sequence: trim to max length, mask pads.
    lengths_np = np.asarray(lengths)
    T = int(lengths_np.max())
    xw = xw.reshape(S, B, 8 * H)[:T]                              # (T, B, 8H)
    xw2 = jnp.stack([xw[..., :4 * H], xw[..., 4 * H:]], axis=0)   # (2, T, B, 4H)

    # Pad B to a sublane multiple (padded rows get length 0) and T to a
    # multiple of the time chunk (padded steps are masked out).
    b_pad = _round_up(B, 8)
    tc = min(T, 64)
    t_pad = _round_up(T, tc)
    xw2 = jnp.pad(xw2, ((0, 0), (0, t_pad - T), (0, b_pad - B), (0, 0)))
    lens = jnp.pad(jnp.asarray(lengths_np, jnp.int32),
                   (0, b_pad - B)).reshape(b_pad, 1)
    whh = jnp.stack([whh_f, whh_b], axis=0).astype(jnp.bfloat16)  # (2, H, 4H)

    out = bilstm(xw2, lens, whh, tc)                  # (T_pad, B_pad, 2H)
    h = out[:T, :B].reshape(T * B, 2 * H)             # time-major rows

    # Fused nn1..nn8 (ReLU on all but the last layer); last layer padded to
    # 128 output columns for a lane-dense store, sliced back to 1 column here.
    mlp = params["mlp"]
    mlp_layers = [(w, b, True) for (w, b) in mlp[:-1]]
    w_last, b_last = mlp[-1]
    pad_cols = 128 - w_last.shape[1]
    mlp_layers.append((jnp.pad(w_last, ((0, 0), (0, pad_cols))),
                       jnp.pad(b_last, ((0, 0), (0, pad_cols))), False))
    y = fused_mlp(h, mlp_layers)[:, :1]               # (T*B, 1)

    # Only the width-1 result gets transposed back to batch-major.
    return jnp.transpose(y.reshape(T, B, 1), (1, 0, 2))


# ---------------------------------------------------------------------------
# Pure-JAX reference (same bf16-operand / f32-accumulate numerics policy as
# the kernels, so the parity check isolates the Pallas implementation).
# ---------------------------------------------------------------------------
def _ref_dense(x, w, b, relu):
    y = jnp.dot(x.astype(jnp.bfloat16), w.astype(jnp.bfloat16),
                preferred_element_type=jnp.float32) + b
    return jnp.maximum(y, 0.0) if relu else y


def _ref_lstm_direction(seq, valid, wih_t, whh_t, bias):
    B, T, D = seq.shape
    H = whh_t.shape[0]
    wih_bf = wih_t.astype(jnp.bfloat16)
    whh_bf = whh_t.astype(jnp.bfloat16)

    def step(carry, inp):
        h, c = carry
        x_t, m_t = inp
        xw_t = jnp.dot(x_t.astype(jnp.bfloat16), wih_bf,
                       preferred_element_type=jnp.float32) + bias
        gates = xw_t + jnp.dot(h.astype(jnp.bfloat16), whh_bf,
                               preferred_element_type=jnp.float32)
        i = jax.nn.sigmoid(gates[:, :H])
        f = jax.nn.sigmoid(gates[:, H:2 * H])
        g = jnp.tanh(gates[:, 2 * H:3 * H])
        o = jax.nn.sigmoid(gates[:, 3 * H:])
        c_new = f * c + i * g
        h_new = o * jnp.tanh(c_new)
        m = m_t[:, None] > 0.5
        return (jnp.where(m, h_new, h), jnp.where(m, c_new, c)), \
            jnp.where(m, h_new, 0.0)

    init = (jnp.zeros((B, H), jnp.float32), jnp.zeros((B, H), jnp.float32))
    xs = (jnp.swapaxes(seq, 0, 1), jnp.swapaxes(valid, 0, 1))
    _, outs = lax.scan(step, init, xs)
    return jnp.swapaxes(outs, 0, 1)


def ref_forward(x, lengths, params):
    B, S, F = x.shape
    h = x.reshape(B * S, F).astype(jnp.float32)
    for w, b in params["bnn"]:
        h = _ref_dense(h, w, b, True)
    feat = h.reshape(B, S, -1)
    lengths_np = np.asarray(lengths)
    T = int(lengths_np.max())
    feat = feat[:, :T]
    lengths_d = jnp.asarray(lengths_np, jnp.int32)
    t_idx = jnp.arange(T)
    valid = (t_idx[None, :] < lengths_d[:, None]).astype(jnp.float32)
    batch_idx = jnp.arange(B)[:, None]
    out_f = _ref_lstm_direction(feat, valid, *params["lstm_fwd"])
    rev_idx = jnp.clip(lengths_d[:, None] - 1 - t_idx[None, :], 0, T - 1)
    out_b_r = _ref_lstm_direction(feat[batch_idx, rev_idx], valid,
                                  *params["lstm_bwd"])
    out_b = out_b_r[batch_idx, rev_idx] * valid[:, :, None]
    h = jnp.concatenate([out_f, out_b], axis=-1).reshape(B * T, -1)
    n_mlp = len(params["mlp"])
    for i, (w, b) in enumerate(params["mlp"]):
        h = _ref_dense(h, w, b, i < n_mlp - 1)
    return h.reshape(B, T, 1)


# ---------------------------------------------------------------------------
# Deterministic parameter init (synthetic; no checkpoint loading)
# ---------------------------------------------------------------------------
def init_params(key, input_size, hidden1):
    bnn_dims = [(input_size, 32), (32, 64), (64, 64), (64, 64)]
    mlp_dims = [(2 * hidden1, 2 * hidden1), (2 * hidden1, 512), (512, 512),
                (512, 256), (256, 256), (256, 128), (128, 32), (32, 1)]
    keys = jax.random.split(key, 2 * (len(bnn_dims) + len(mlp_dims)) + 6)
    it = iter(range(len(keys)))

    def lin(fan_in, fan_out):
        s = 1.0 / np.sqrt(fan_in)
        w = jax.random.uniform(keys[next(it)], (fan_in, fan_out), jnp.float32, -s, s)
        b = jax.random.uniform(keys[next(it)], (1, fan_out), jnp.float32, -s, s)
        return w, b

    def lstm_dir(din, H):
        s = 1.0 / np.sqrt(H)
        wih_t = jax.random.uniform(keys[next(it)], (din, 4 * H), jnp.float32, -s, s)
        whh_t = jax.random.uniform(keys[next(it)], (H, 4 * H), jnp.float32, -s, s)
        bias = jax.random.uniform(keys[next(it)], (1, 4 * H), jnp.float32, -s, s)
        return wih_t, whh_t, bias

    return {
        "bnn": [lin(a, b) for a, b in bnn_dims],
        "lstm_fwd": lstm_dir(64, hidden1),
        "lstm_bwd": lstm_dir(64, hidden1),
        "mlp": [lin(a, b) for a, b in mlp_dims],
    }


if __name__ == "__main__":
    B, S, F = 2, 8, 28          # batch, padded seq_len, input_size
    hidden1 = 128               # hidden_size1 reduced from 512 for a small run
    lengths = np.array([8, 5], dtype=np.int32)   # array_lengths (must be >= 1)

    key = jax.random.PRNGKey(0)
    kx, kp = jax.random.split(key)
    x = jax.random.normal(kx, (B, S, F), jnp.float32)
    params = init_params(kp, F, hidden1)

    out = jax.block_until_ready(rnn_forward(x, lengths, params))
    ref = jax.block_until_ready(ref_forward(x, lengths, params))

    assert out.shape == (B, int(lengths.max()), 1), out.shape
    np.testing.assert_allclose(np.asarray(out), np.asarray(ref),
                               rtol=5e-3, atol=5e-3)
    print("KERNEL_OK")
</pallas_src>

<mosaic_0001>
module attributes {stable_mosaic.version = 11 : i64} {
  func.func @_probe(%arg0: i32, %arg1: memref<8x128xf32, #tpu.memory_space<vmem>>, %arg2: memref<8x128xf32, #tpu.memory_space<vmem>>) attributes {dimension_semantics = [#tpu.dimension_semantics<arbitrary>], iteration_bounds = array<i64: 1>, scalar_prefetch = 0 : i64, scratch_operands = 0 : i64, tpu.core_type = #tpu.core_type<tc>, window_params = [{pipeline_mode = #tpu.pipeline_mode<synchronous>, transform_indices = @transform_0, window_bounds = array<i64: 8, 128>}, {pipeline_mode = #tpu.pipeline_mode<synchronous>, transform_indices = @transform_1, window_bounds = array<i64: 8, 128>}]} {
    %c0 = arith.constant 0 : index
    %c0_0 = arith.constant 0 : index
    %0 = vector.load %arg1[%c0, %c0_0] : memref<8x128xf32, #tpu.memory_space<vmem>>, vector<8x128xf32>
    %c0_1 = arith.constant 0 : index
    %c0_2 = arith.constant 0 : index
    %1 = vector.load %arg2[%c0_1, %c0_2] : memref<8x128xf32, #tpu.memory_space<vmem>>, vector<8x128xf32>
    tpu.vector_store %arg2[%c0_1, %c0_2], %0 {strides = array<i32>} : memref<8x128xf32, #tpu.memory_space<vmem>>, vector<8x128xf32>,
    return
  }
  func.func @transform_0(%arg0: i32) -> (i32, i32) {
    %c0_i32 = arith.constant 0 : i32
    %c0_i32_0 = arith.constant 0 : i32
    %c0_i32_1 = arith.constant 0 : i32
    return %c0_i32, %c0_i32_0 : i32, i32
  }
  func.func @transform_1(%arg0: i32) -> (i32, i32) {
    %c0_i32 = arith.constant 0 : i32
    %c0_i32_0 = arith.constant 0 : i32
    %c0_i32_1 = arith.constant 0 : i32
    return %c0_i32, %c0_i32_0 : i32, i32
  }
}

module attributes {stable_mosaic.version = 11 : i64} {
  func.func @_fused_mlp_kernel(%arg0: i32, %arg1: memref<16x28xf32, #tpu.memory_space<vmem>>, %arg2: memref<28x32xbf16, #tpu.memory_space<vmem>>, %arg3: memref<1x32xf32, #tpu.memory_space<vmem>>, %arg4: memref<32x64xbf16, #tpu.memory_space<vmem>>, %arg5: memref<1x64xf32, #tpu.memory_space<vmem>>, %arg6: memref<64x64xbf16, #tpu.memory_space<vmem>>, %arg7: memref<1x64xf32, #tpu.memory_space<vmem>>, %arg8: memref<64x64xbf16, #tpu.memory_space<vmem>>, %arg9: memref<1x64xf32, #tpu.memory_space<vmem>>, %arg10: memref<64x1024xbf16, #tpu.memory_space<vmem>>, %arg11: memref<1x1024xf32, #tpu.memory_space<vmem>>, %arg12: memref<16x1024xf32, #tpu.memory_space<vmem>>) attributes {dimension_semantics = [#tpu.dimension_semantics<parallel>], iteration_bounds = array<i64: 1>, scalar_prefetch = 0 : i64, scratch_operands = 0 : i64, tpu.core_type = #tpu.core_type<tc>, window_params = [{transform_indices = @transform_0, window_bounds = array<i64: 16, 28>}, {pipeline_mode = #tpu.pipeline_mode<synchronous>, transform_indices = @transform_1, window_bounds = array<i64: 28, 32>}, {pipeline_mode = #tpu.pipeline_mode<synchronous>, transform_indices = @transform_2, window_bounds = array<i64: 1, 32>}, {pipeline_mode = #tpu.pipeline_mode<synchronous>, transform_indices = @transform_3, window_bounds = array<i64: 32, 64>}, {pipeline_mode = #tpu.pipeline_mode<synchronous>, transform_indices = @transform_4, window_bounds = array<i64: 1, 64>}, {pipeline_mode = #tpu.pipeline_mode<synchronous>, transform_indices = @transform_5, window_bounds = array<i64: 64, 64>}, {pipeline_mode = #tpu.pipeline_mode<synchronous>, transform_indices = @transform_6, window_bounds = array<i64: 1, 64>}, {pipeline_mode = #tpu.pipeline_mode<synchronous>, transform_indices = @transform_7, window_bounds = array<i64: 64, 64>}, {pipeline_mode = #tpu.pipeline_mode<synchronous>, transform_indices = @transform_8, window_bounds = array<i64: 1, 64>}, {pipeline_mode = #tpu.pipeline_mode<synchronous>, transform_indices = @transform_9, window_bounds = array<i64: 64, 1024>}, {pipeline_mode = #tpu.pipeline_mode<synchronous>, transform_indices = @transform_10, window_bounds = array<i64: 1, 1024>}, {transform_indices = @transform_11, window_bounds = array<i64: 16, 1024>}]} {
    %c0 = arith.constant 0 : index
    %c0_0 = arith.constant 0 : index
    %0 = vector.load %arg1[%c0, %c0_0] : memref<16x28xf32, #tpu.memory_space<vmem>>, vector<16x28xf32>
    %c0_1 = arith.constant 0 : index
    %c0_2 = arith.constant 0 : index
    %1 = vector.load %arg2[%c0_1, %c0_2] : memref<28x32xbf16, #tpu.memory_space<vmem>>, vector<28x32xbf16>
    %c0_3 = arith.constant 0 : index
    %c0_4 = arith.constant 0 : index
    %2 = vector.load %arg3[%c0_3, %c0_4] : memref<1x32xf32, #tpu.memory_space<vmem>>, vector<1x32xf32>
    %3 = arith.truncf %0 : vector<16x28xf32> to vector<16x28xbf16>
    %cst = arith.constant dense<0.000000e+00> : vector<16x32xf32>
    %4 = tpu.matmul %3, %1, %cst {dimension_numbers = #tpu.dot_dimension_numbers<[1], [0], [0], [1], [0, 0, 1, 1], [], []>} : vector<16x28xbf16>, vector<28x32xbf16>, vector<16x32xf32> -> vector<16x32xf32>
    %5 = vector.broadcast %2 : vector<1x32xf32> to vector<16x32xf32>
    %6 = arith.addf %4, %5 : vector<16x32xf32>
    %cst_5 = arith.constant 0.000000e+00 : f32
    %7 = vector.broadcast %cst_5 : f32 to vector<16x32xf32>
    %8 = arith.maximumf %6, %7 : vector<16x32xf32>
    %c0_6 = arith.constant 0 : index
    %c0_7 = arith.constant 0 : index
    %9 = vector.load %arg4[%c0_6, %c0_7] : memref<32x64xbf16, #tpu.memory_space<vmem>>, vector<32x64xbf16>
    %c0_8 = arith.constant 0 : index
    %c0_9 = arith.constant 0 : index
    %10 = vector.load %arg5[%c0_8, %c0_9] : memref<1x64xf32, #tpu.memory_space<vmem>>, vector<1x64xf32>
    %11 = arith.truncf %8 : vector<16x32xf32> to vector<16x32xbf16>
    %cst_10 = arith.constant dense<0.000000e+00> : vector<16x64xf32>
    %12 = tpu.matmul %11, %9, %cst_10 {dimension_numbers = #tpu.dot_dimension_numbers<[1], [0], [0], [1], [0, 0, 1, 1], [], []>} : vector<16x32xbf16>, vector<32x64xbf16>, vector<16x64xf32> -> vector<16x64xf32>
    %13 = vector.broadcast %10 : vector<1x64xf32> to vector<16x64xf32>
    %14 = arith.addf %12, %13 : vector<16x64xf32>
    %cst_11 = arith.constant 0.000000e+00 : f32
    %15 = vector.broadcast %cst_11 : f32 to vector<16x64xf32>
    %16 = arith.maximumf %14, %15 : vector<16x64xf32>
    %c0_12 = arith.constant 0 : index
    %c0_13 = arith.constant 0 : index
    %17 = vector.load %arg6[%c0_12, %c0_13] : memref<64x64xbf16, #tpu.memory_space<vmem>>, vector<64x64xbf16>
    %c0_14 = arith.constant 0 : index
    %c0_15 = arith.constant 0 : index
    %18 = vector.load %arg7[%c0_14, %c0_15] : memref<1x64xf32, #tpu.memory_space<vmem>>, vector<1x64xf32>
    %19 = arith.truncf %16 : vector<16x64xf32> to vector<16x64xbf16>
    %cst_16 = arith.constant dense<0.000000e+00> : vector<16x64xf32>
    %20 = tpu.matmul %19, %17, %cst_16 {dimension_numbers = #tpu.dot_dimension_numbers<[1], [0], [0], [1], [0, 0, 1, 1], [], []>} : vector<16x64xbf16>, vector<64x64xbf16>, vector<16x64xf32> -> vector<16x64xf32>
    %21 = vector.broadcast %18 : vector<1x64xf32> to vector<16x64xf32>
    %22 = arith.addf %20, %21 : vector<16x64xf32>
    %cst_17 = arith.constant 0.000000e+00 : f32
    %23 = vector.broadcast %cst_17 : f32 to vector<16x64xf32>
    %24 = arith.maximumf %22, %23 : vector<16x64xf32>
    %c0_18 = arith.constant 0 : index
    %c0_19 = arith.constant 0 : index
    %25 = vector.load %arg8[%c0_18, %c0_19] : memref<64x64xbf16, #tpu.memory_space<vmem>>, vector<64x64xbf16>
    %c0_20 = arith.constant 0 : index
    %c0_21 = arith.constant 0 : index
    %26 = vector.load %arg9[%c0_20, %c0_21] : memref<1x64xf32, #tpu.memory_space<vmem>>, vector<1x64xf32>
    %27 = arith.truncf %24 : vector<16x64xf32> to vector<16x64xbf16>
    %cst_22 = arith.constant dense<0.000000e+00> : vector<16x64xf32>
    %28 = tpu.matmul %27, %25, %cst_22 {dimension_numbers = #tpu.dot_dimension_numbers<[1], [0], [0], [1], [0, 0, 1, 1], [], []>} : vector<16x64xbf16>, vector<64x64xbf16>, vector<16x64xf32> -> vector<16x64xf32>
    %29 = vector.broadcast %26 : vector<1x64xf32> to vector<16x64xf32>
    %30 = arith.addf %28, %29 : vector<16x64xf32>
    %cst_23 = arith.constant 0.000000e+00 : f32
    %31 = vector.broadcast %cst_23 : f32 to vector<16x64xf32>
    %32 = arith.maximumf %30, %31 : vector<16x64xf32>
    %c0_24 = arith.constant 0 : index
    %c0_25 = arith.constant 0 : index
    %33 = vector.load %arg10[%c0_24, %c0_25] : memref<64x1024xbf16, #tpu.memory_space<vmem>>, vector<64x1024xbf16>
    %c0_26 = arith.constant 0 : index
    %c0_27 = arith.constant 0 : index
    %34 = vector.load %arg11[%c0_26, %c0_27] : memref<1x1024xf32, #tpu.memory_space<vmem>>, vector<1x1024xf32>
    %35 = arith.truncf %32 : vector<16x64xf32> to vector<16x64xbf16>
    %cst_28 = arith.constant dense<0.000000e+00> : vector<16x1024xf32>
    %36 = tpu.matmul %35, %33, %cst_28 {dimension_numbers = #tpu.dot_dimension_numbers<[1], [0], [0], [1], [0, 0, 1, 1], [], []>} : vector<16x64xbf16>, vector<64x1024xbf16>, vector<16x1024xf32> -> vector<16x1024xf32>
    %37 = vector.broadcast %34 : vector<1x1024xf32> to vector<16x1024xf32>
    %38 = arith.addf %36, %37 : vector<16x1024xf32>
    %c0_29 = arith.constant 0 : index
    %c0_30 = arith.constant 0 : index
    %39 = vector.load %arg12[%c0_29, %c0_30] : memref<16x1024xf32, #tpu.memory_space<vmem>>, vector<16x1024xf32>
    tpu.vector_store %arg12[%c0_29, %c0_30], %38 {strides = array<i32>} : memref<16x1024xf32, #tpu.memory_space<vmem>>, vector<16x1024xf32>,
    return
  }
  func.func @transform_0(%arg0: i32) -> (i32, i32) {
    %c0_i32 = arith.constant 0 : i32
    %c0_i32_0 = arith.constant 0 : i32
    return %arg0, %c0_i32 : i32, i32
  }
  func.func @transform_1(%arg0: i32) -> (i32, i32) {
    %c0_i32 = arith.constant 0 : i32
    %c0_i32_0 = arith.constant 0 : i32
    %c0_i32_1 = arith.constant 0 : i32
    return %c0_i32, %c0_i32_0 : i32, i32
  }
  func.func @transform_2(%arg0: i32) -> (i32, i32) {
    %c0_i32 = arith.constant 0 : i32
    %c0_i32_0 = arith.constant 0 : i32
    %c0_i32_1 = arith.constant 0 : i32
    return %c0_i32, %c0_i32_0 : i32, i32
  }
  func.func @transform_3(%arg0: i32) -> (i32, i32) {
    %c0_i32 = arith.constant 0 : i32
    %c0_i32_0 = arith.constant 0 : i32
    %c0_i32_1 = arith.constant 0 : i32
    return %c0_i32, %c0_i32_0 : i32, i32
  }
  func.func @transform_4(%arg0: i32) -> (i32, i32) {
    %c0_i32 = arith.constant 0 : i32
    %c0_i32_0 = arith.constant 0 : i32
    %c0_i32_1 = arith.constant 0 : i32
    return %c0_i32, %c0_i32_0 : i32, i32
  }
  func.func @transform_5(%arg0: i32) -> (i32, i32) {
    %c0_i32 = arith.constant 0 : i32
    %c0_i32_0 = arith.constant 0 : i32
    %c0_i32_1 = arith.constant 0 : i32
    return %c0_i32, %c0_i32_0 : i32, i32
  }
  func.func @transform_6(%arg0: i32) -> (i32, i32) {
    %c0_i32 = arith.constant 0 : i32
    %c0_i32_0 = arith.constant 0 : i32
    %c0_i32_1 = arith.constant 0 : i32
    return %c0_i32, %c0_i32_0 : i32, i32
  }
  func.func @transform_7(%arg0: i32) -> (i32, i32) {
    %c0_i32 = arith.constant 0 : i32
    %c0_i32_0 = arith.constant 0 : i32
    %c0_i32_1 = arith.constant 0 : i32
    return %c0_i32, %c0_i32_0 : i32, i32
  }
  func.func @transform_8(%arg0: i32) -> (i32, i32) {
    %c0_i32 = arith.constant 0 : i32
    %c0_i32_0 = arith.constant 0 : i32
    %c0_i32_1 = arith.constant 0 : i32
    return %c0_i32, %c0_i32_0 : i32, i32
  }
  func.func @transform_9(%arg0: i32) -> (i32, i32) {
    %c0_i32 = arith.constant 0 : i32
    %c0_i32_0 = arith.constant 0 : i32
    %c0_i32_1 = arith.constant 0 : i32
    return %c0_i32, %c0_i32_0 : i32, i32
  }
  func.func @transform_10(%arg0: i32) -> (i32, i32) {
    %c0_i32 = arith.constant 0 : i32
    %c0_i32_0 = arith.constant 0 : i32
    %c0_i32_1 = arith.constant 0 : i32
    return %c0_i32, %c0_i32_0 : i32, i32
  }
  func.func @transform_11(%arg0: i32) -> (i32, i32) {
    %c0_i32 = arith.constant 0 : i32
    %c0_i32_0 = arith.constant 0 : i32
    return %arg0, %c0_i32 : i32, i32
  }
}

</mosaic_0001>

<llo_original>
// kernel: tpu_custom_call.1
$region0: #{tpu_custom_call.1}
  #allocation0 [shape = 'u32[]', space=smem, size = 0x4, offset = 0x4, fixed_abs, tag = 'smem constant byte address 0x4 - core index']
  #allocation1 [shape = 'u32[144,128]{1,0:T(1,128)}', space=vmem, size = 0x12000, scoped, tag = 'internal scratch']
  %s0 = inlined_call_operand.hbm [shape: f32[8,128], index: 0, kind: input, shape index: {}]
  %s1 = inlined_call_operand.hbm [shape: f32[8,128], index: 1, kind: output, shape index: {}]
  %s2 = sld [smem:[#allocation0]]
  $region18: #{tpu_custom_call.1} parent=0
    _
  %s4 = ssub.s32 1, %s2
  %s5 = scalar_select 0, %s4, %s2
  $region1: #{tpu_custom_call.1} parent=0
    #allocation2 [shape = 'u8[4096]{0}', space=vmem, size = 0x1000, scoped, tag = 'input window, operand 0, single buffered']
    #allocation3 [shape = 's32[1]{0}', space=sflag, size = 0x4, scoped, tag = 'scoped memory for tpu_custom_call.1']
    #allocation4 [shape = 's32[1]{0}', space=sflag, size = 0x4, scoped, tag = 'scoped memory for tpu_custom_call.1']
    #allocation5 [shape = 'u8[4096]{0}', space=vmem, size = 0x1000, scoped, tag = 'output window, operand 0, single buffered']
    %6 = vsyncpa [#allocation3], 0
    %7 = vsyncpa [#allocation4], 0
    // Predicated region
    $region2: #{tpu_custom_call.1} parent=1 // pred_check
      _
    $region3: #{tpu_custom_call.1} parent=1 // pred_check_branch
      %9 = sbr.rel (0) target = $region5
    $region4: #{tpu_custom_call.1} parent=1 // pred_region
      %s11 = ssub.s32 128, 128
      %12 = vsyncadd [#allocation3], %s11
      %s14 = sshll.u32 [#allocation2], 4
      %s15 = int_to_ptr.vmem [resolvable:$true] %s14
      %17 = dma.hbm_to_vmem [thread:$0]  %s0, 128, %s15, [#allocation3]
    $region5: #{tpu_custom_call.1} parent=1 // pred_fallthru
      _
    // Predicated region
    $region6: #{tpu_custom_call.1} parent=1 // pred_check
      _
    $region7: #{tpu_custom_call.1} parent=1 // pred_check_branch
      %19 = sbr.rel (0) target = $region9
    $region8: #{tpu_custom_call.1} parent=1 // pred_region
      %20 = dma.done [#allocation3], 128
    $region9: #{tpu_custom_call.1} parent=1 // pred_fallthru
      _
    %v21 = vld [vmem:[#allocation2] sm:$0xff]
    %22 = vst [vmem:[#allocation5] sm:$0xff] %v21
    // Predicated region
    $region10: #{tpu_custom_call.1} parent=1 // pred_check
      _
    $region11: #{tpu_custom_call.1} parent=1 // pred_check_branch
      %24 = sbr.rel (0) target = $region13
    $region12: #{tpu_custom_call.1} parent=1 // pred_region
      %s26 = ssub.s32 128, 128
      %27 = vsyncadd [#allocation4], %s26
      %s29 = sshll.u32 [#allocation5], 4
      %s30 = int_to_ptr.vmem [resolvable:$true] %s29
      %32 = dma.vmem_to_hbm [thread:$0]  %s30, 128, %s1, [#allocation4]
    $region13: #{tpu_custom_call.1} parent=1 // pred_fallthru
      _
    // Predicated region
    $region14: #{tpu_custom_call.1} parent=1 // pred_check
      _
    $region15: #{tpu_custom_call.1} parent=1 // pred_check_branch
      %34 = sbr.rel (0) target = $region17
    $region16: #{tpu_custom_call.1} parent=1 // pred_region
      %35 = dma.done [#allocation4], 128
    $region17: #{tpu_custom_call.1} parent=1 // pred_fallthru
      _
    %36 = vsyncpa [#allocation3], 1
    %37 = vsyncpa [#allocation4], 1

// kernel: tpu_custom_call.1
$region0: #{tpu_custom_call.1}
  #allocation0 [shape = 'u32[]', space=smem, size = 0x4, offset = 0x4, fixed_abs, tag = 'smem constant byte address 0x4 - core index']
  #allocation1 [shape = 'u32[144,128]{1,0:T(1,128)}', space=vmem, size = 0x12000, scoped, tag = 'internal scratch']
  %s0 = inlined_call_operand.hbm [shape: f32[16,28], index: 0, kind: input, shape index: {}]
  %s1 = inlined_call_operand.hbm [shape: bf16[28,32], index: 1, kind: input, shape index: {}]
  %s2 = inlined_call_operand.vmem [shape: f32[1,32], index: 2, kind: input, shape index: {}]
  %s3 = inlined_call_operand.hbm [shape: bf16[32,64], index: 3, kind: input, shape index: {}]
  %s4 = inlined_call_operand.vmem [shape: f32[1,64], index: 4, kind: input, shape index: {}]
  %s5 = inlined_call_operand.hbm [shape: bf16[64,64], index: 5, kind: input, shape index: {}]
  %s6 = inlined_call_operand.vmem [shape: f32[1,64], index: 6, kind: input, shape index: {}]
  %s7 = inlined_call_operand.hbm [shape: bf16[64,64], index: 7, kind: input, shape index: {}]
  %s8 = inlined_call_operand.vmem [shape: f32[1,64], index: 8, kind: input, shape index: {}]
  %s9 = inlined_call_operand.hbm [shape: bf16[64,1024], index: 9, kind: input, shape index: {}]
  %s10 = inlined_call_operand.vmem [shape: f32[1,1024], index: 10, kind: input, shape index: {}]
  %s11 = inlined_call_operand.hbm [shape: f32[16,1024], index: 11, kind: output, shape index: {}]
  %s12 = sld [smem:[#allocation0]]
  $region78: #{tpu_custom_call.1} parent=0
    _
  %s14 = ssub.s32 1, %s12
  %s15 = scalar_select 0, %s14, %s12
  $region1: #{tpu_custom_call.1} parent=0
    #allocation2 [shape = 'u8[8192]{0}', space=vmem, size = 0x2000, scoped, tag = 'input window, operand 0, single buffered']
    #allocation3 [shape = 's32[1]{0}', space=sflag, size = 0x4, scoped, tag = 'scoped memory for tpu_custom_call.1']
    #allocation4 [shape = 's32[1]{0}', space=sflag, size = 0x4, scoped, tag = 'scoped memory for tpu_custom_call.1']
    #allocation5 [shape = 'u8[8192]{0}', space=vmem, size = 0x2000, scoped, tag = 'input window, operand 1, single buffered']
    #allocation6 [shape = 's32[1]{0}', space=sflag, size = 0x4, scoped, tag = 'scoped memory for tpu_custom_call.1']
    #allocation7 [shape = 'u8[8192]{0}', space=vmem, size = 0x2000, scoped, tag = 'input window, operand 3, single buffered']
    #allocation8 [shape = 'u8[16384]{0}', space=vmem, size = 0x4000, scoped, tag = 'input window, operand 5, single buffered']
    #allocation9 [shape = 's32[1]{0}', space=sflag, size = 0x4, scoped, tag = 'scoped memory for tpu_custom_call.1']
    #allocation10 [shape = 'u8[16384]{0}', space=vmem, size = 0x4000, scoped, tag = 'input window, operand 7, single buffered']
    #allocation11 [shape = 'u8[131072]{0}', space=vmem, size = 0x20000, scoped, tag = 'input window, operand 9, single buffered']
    #allocation12 [shape = 's32[1]{0}', space=sflag, size = 0x4, scoped, tag = 'scoped memory for tpu_custom_call.1']
    #allocation13 [shape = 'u8[65536]{0}', space=vmem, size = 0x10000, scoped, tag = 'output window, operand 0, single buffered']
    %16 = vsyncpa [#allocation3], 0
    %17 = vsyncpa [#allocation6], 0
    %18 = vsyncpa [#allocation9], 0
    %19 = vsyncpa [#allocation12], 0
    %20 = vsyncpa [#allocation4], 0
    // Predicated region
    $region2: #{tpu_custom_call.1} parent=1 // pred_check
      _
    $region3: #{tpu_custom_call.1} parent=1 // pred_check_branch
      %22 = sbr.rel (0) target = $region5
    $region4: #{tpu_custom_call.1} parent=1 // pred_region
      %s24 = ssub.s32 256, 256
      %25 = vsyncadd [#allocation3], %s24
      %s26 = sshll.u32 [#allocation2], 4
      %s27 = int_to_ptr.vmem [resolvable:$true] %s26
      %32 = dma.hbm_to_vmem [thread:$0]  %s0, 256, %s27, [#allocation3], 128, 128, 8
    $region5: #{tpu_custom_call.1} parent=1 // pred_fallthru
      _
    // Predicated region
    $region6: #{tpu_custom_call.1} parent=1 // pred_check
      _
    $region7: #{tpu_custom_call.1} parent=1 // pred_check_branch
      %34 = sbr.rel (0) target = $region9
    $region8: #{tpu_custom_call.1} parent=1 // pred_region
      %s36 = ssub.s32 256, 256
      %37 = vsyncadd [#allocation6], %s36
      %s38 = sshll.u32 [#allocation5], 4
      %s39 = int_to_ptr.vmem [resolvable:$true] %s38
      %44 = dma.hbm_to_vmem [thread:$0]  %s1, 256, %s39, [#allocation6], 64, 64, 4
    $region9: #{tpu_custom_call.1} parent=1 // pred_fallthru
      _
    // Predicated region
    $region10: #{tpu_custom_call.1} parent=1 // pred_check
      _
    $region11: #{tpu_custom_call.1} parent=1 // pred_check_branch
      %46 = sbr.rel (0) target = $region13
    $region12: #{tpu_custom_call.1} parent=1 // pred_region
      _
    $region13: #{tpu_custom_call.1} parent=1 // pred_fallthru
      _
    // Predicated region
    $region14: #{tpu_custom_call.1} parent=1 // pred_check
      _
    $region15: #{tpu_custom_call.1} parent=1 // pred_check_branch
      %48 = sbr.rel (0) target = $region17
    $region16: #{tpu_custom_call.1} parent=1 // pred_region
      %s50 = ssub.s32 256, 256
      %51 = vsyncadd [#allocation6], %s50
      %s52 = sshll.u32 [#allocation7], 4
      %s53 = int_to_ptr.vmem [resolvable:$true] %s52
      %58 = dma.hbm_to_vmem [thread:$0]  %s3, 256, %s53, [#allocation6], 64, 64, 4
    $region17: #{tpu_custom_call.1} parent=1 // pred_fallthru
      _
    // Predicated region
    $region18: #{tpu_custom_call.1} parent=1 // pred_check
      _
    $region19: #{tpu_custom_call.1} parent=1 // pred_check_branch
      %60 = sbr.rel (0) target = $region21
    $region20: #{tpu_custom_call.1} parent=1 // pred_region
      _
    $region21: #{tpu_custom_call.1} parent=1 // pred_fallthru
      _
    // Predicated region
    $region22: #{tpu_custom_call.1} parent=1 // pred_check
      _
    $region23: #{tpu_custom_call.1} parent=1 // pred_check_branch
      %62 = sbr.rel (0) target = $region25
    $region24: #{tpu_custom_call.1} parent=1 // pred_region
      %s64 = ssub.s32 512, 512
      %65 = vsyncadd [#allocation9], %s64
      %s66 = sshll.u32 [#allocation8], 4
      %s67 = int_to_ptr.vmem [resolvable:$true] %s66
      %72 = dma.hbm_to_vmem [thread:$0]  %s5, 512, %s67, [#allocation9], 64, 64, 4
    $region25: #{tpu_custom_call.1} parent=1 // pred_fallthru
      _
    // Predicated region
    $region26: #{tpu_custom_call.1} parent=1 // pred_check
      _
    $region27: #{tpu_custom_call.1} parent=1 // pred_check_branch
      %74 = sbr.rel (0) target = $region29
    $region28: #{tpu_custom_call.1} parent=1 // pred_region
      _
    $region29: #{tpu_custom_call.1} parent=1 // pred_fallthru
      _
    // Predicated region
    $region30: #{tpu_custom_call.1} parent=1 // pred_check
      _
    $region31: #{tpu_custom_call.1} parent=1 // pred_check_branch
      %76 = sbr.rel (0) target = $region33
    $region32: #{tpu_custom_call.1} parent=1 // pred_region
      %s78 = ssub.s32 512, 512
      %79 = vsyncadd [#allocation9], %s78
      %s80 = sshll.u32 [#allocation10], 4
      %s81 = int_to_ptr.vmem [resolvable:$true] %s80
      %86 = dma.hbm_to_vmem [thread:$0]  %s7, 512, %s81, [#allocation9], 64, 64, 4
    $region33: #{tpu_custom_call.1} parent=1 // pred_fallthru
      _
    // Predicated region
    $region34: #{tpu_custom_call.1} parent=1 // pred_check
      _
    $region35: #{tpu_custom_call.1} parent=1 // pred_check_branch
      %88 = sbr.rel (0) target = $region37
    $region36: #{tpu_custom_call.1} parent=1 // pred_region
      _
    $region37: #{tpu_custom_call.1} parent=1 // pred_fallthru
      _
    // Predicated region
    $region38: #{tpu_custom_call.1} parent=1 // pred_check
      _
    $region39: #{tpu_custom_call.1} parent=1 // pred_check_branch
      %90 = sbr.rel (0) target = $region41
    $region40: #{tpu_custom_call.1} parent=1 // pred_region
      %s92 = ssub.s32 4096, 4096
      %93 = vsyncadd [#allocation12], %s92
      %s94 = sshll.u32 [#allocation11], 4
      %s95 = int_to_ptr.vmem [resolvable:$true] %s94
      %100 = dma.hbm_to_vmem [thread:$0]  %s9, 4096, %s95, [#allocation12], 512, 512, 32
    $region41: #{tpu_custom_call.1} parent=1 // pred_fallthru
      _
    // Predicated region
    $region42: #{tpu_custom_call.1} parent=1 // pred_check
      _
    $region43: #{tpu_custom_call.1} parent=1 // pred_check_branch
      %102 = sbr.rel (0) target = $region45
    $region44: #{tpu_custom_call.1} parent=1 // pred_region
      _
    $region45: #{tpu_custom_call.1} parent=1 // pred_fallthru
      _
    // Predicated region
    $region46: #{tpu_custom_call.1} parent=1 // pred_check
      _
    $region47: #{tpu_custom_call.1} parent=1 // pred_check_branch
      %104 = sbr.rel (0) target = $region49
    $region48: #{tpu_custom_call.1} parent=1 // pred_region
      %105 = dma.done [#allocation3], 256
    $region49: #{tpu_custom_call.1} parent=1 // pred_fallthru
      _
    // Predicated region
    $region50: #{tpu_custom_call.1} parent=1 // pred_check
      _
    $region51: #{tpu_custom_call.1} parent=1 // pred_check_branch
      %107 = sbr.rel (0) target = $region53
    $region52: #{tpu_custom_call.1} parent=1 // pred_region
      %108 = dma.done [#allocation6], 256
    $region53: #{tpu_custom_call.1} parent=1 // pred_fallthru
      _
    // Predicated region
    $region54: #{tpu_custom_call.1} parent=1 // pred_check
      _
    $region55: #{tpu_custom_call.1} parent=1 // pred_check_branch
      %110 = sbr.rel (0) target = $region57
    $region56: #{tpu_custom_call.1} parent=1 // pred_region
      %111 = dma.done [#allocation6], 256
    $region57: #{tpu_custom_call.1} parent=1 // pred_fallthru
      _
    // Predicated region
    $region58: #{tpu_custom_call.1} parent=1 // pred_check
      _
    $region59: #{tpu_custom_call.1} parent=1 // pred_check_branch
      %113 = sbr.rel (0) target = $region61
    $region60: #{tpu_custom_call.1} parent=1 // pred_region
      %114 = dma.done [#allocation9], 512
    $region61: #{tpu_custom_call.1} parent=1 // pred_fallthru
      _
    // Predicated region
    $region62: #{tpu_custom_call.1} parent=1 // pred_check
      _
    $region63: #{tpu_custom_call.1} parent=1 // pred_check_branch
      %116 = sbr.rel (0) target = $region65
    $region64: #{tpu_custom_call.1} parent=1 // pred_region
      %117 = dma.done [#allocation9], 512
    $region65: #{tpu_custom_call.1} parent=1 // pred_fallthru
      _
    // Predicated region
    $region66: #{tpu_custom_call.1} parent=1 // pred_check
      _
    $region67: #{tpu_custom_call.1} parent=1 // pred_check_branch
      %119 = sbr.rel (0) target = $region69
    $region68: #{tpu_custom_call.1} parent=1 // pred_region
      %120 = dma.done [#allocation12], 4096
    $region69: #{tpu_custom_call.1} parent=1 // pred_fallthru
      _
    %v122 = vld [vmem:[#allocation2] sm:$0xff]
    %v123 = vld [vmem:[#allocation2 + $0x8] sm:$0xff]
    %v124 = vld [vmem:[#allocation5] sm:$0xf]
    %v125 = vld [vmem:[#allocation5 + $0x4] sm:$0xf]
    %v126 = vld [vmem:[#allocation5 + $0x8] sm:$0xf]
    %v127 = vld [vmem:[#allocation5 + $0xc] sm:$0x3]
    %v128 = vld [vmem:[%s2] sm:$0x1]
    %v129 = vpack.c.bf16 %v123, %v122
    %v131 = vlaneseq
    %v132 = vshrl.u32 %v131, 7
    %v133 = vsub.s32 0, %v132
    %v134 = vrot.slane %v128, %v133
    %v140 = vunpack.c.l.b16 %v124
    %v141 = vunpack.c.l.b16 %v125
    %v142 = vunpack.c.l.b16 %v126
    %v143 = vunpack.c.l.b16 %v127
    %v144 = vpack.c.b16 %v141, %v140
    %v145 = vpack.c.b16 %v143, %v142
    %vm147 = vcmask 228352
    %v149 = vsel %vm147, %v129, 0
    %vm151 = vcmask 1045504
    %v153 = vsel %vm151, %v145, 0
    %155 = vmatprep.subr.bf16.mxu0 0
    %156 = vmatpush1.bf16.msra.mxu0 %v144
    %157 = vmatprep.subr.bf16.mxu0 0
    %158 = vmatpush1.bf16.msra.mxu0 %v153
    %159 = vmatprep.subr.bf16.mxu0 0
    %160 = vmatpush1.bf16.msra.mxu0 0
    %161 = vmatprep.subr.bf16.mxu0 0
    %162 = vmatpush1.bf16.msra.mxu0 0
    %163 = vmatprep.subr.bf16.mxu0 0
    %164 = vmatpush1.bf16.msra.mxu0 0
    %165 = vmatprep.subr.bf16.mxu0 0
    %166 = vmatpush1.bf16.msra.mxu0 0
    %167 = vmatprep.subr.bf16.mxu0 0
    %168 = vmatpush1.bf16.msra.mxu0 0
    %169 = vmatprep.subr.bf16.mxu0 0
    %170 = vmatpush1.bf16.msra.mxu0 0
    %171 = vmatprep.subr.bf16.mxu0 0
    %172 = vmatpush1.bf16.msra.mxu0 0
    %173 = vmatprep.subr.bf16.mxu0 0
    %174 = vmatpush1.bf16.msra.mxu0 0
    %175 = vmatprep.subr.bf16.mxu0 0
    %176 = vmatpush1.bf16.msra.mxu0 0
    %177 = vmatprep.subr.bf16.mxu0 0
    %178 = vmatpush1.bf16.msra.mxu0 0
    %179 = vmatprep.subr.bf16.mxu0 0
    %180 = vmatpush1.bf16.msra.mxu0 0
    %181 = vmatprep.subr.bf16.mxu0 0
    %182 = vmatpush1.bf16.msra.mxu0 0
    %183 = vmatprep.subr.bf16.mxu0 0
    %184 = vmatpush1.bf16.msra.mxu0 0
    %185 = vmatprep.subr.bf16.mxu0 0
    %186 = vmatpush1.bf16.msra.mxu0 0
    %187 = vmatprep.mubr.bf16.mxu0 0
    %188 = vmatmul.mubr.bf16.gmra.mrb[0].mxu0 %v149
    %v189 = vpop.f32.mrb[0].mxu0
    %v190 = vadd.f32 %v134, %v189
    %v191 = vpop.f32.mrb[0].mxu0
    %v192 = vpop.f32.mrb[0].mxu0
    %v193 = vadd.f32 %v134, %v192
    %v194 = vpop.f32.mrb[0].mxu0
    %195 = vdwg.mxu0
    %v196 = vmax.f32 %v190, 0.0
    %v197 = vmax.f32 %v193, 0.0
    %v198 = vld [vmem:[#allocation7] sm:$0xf]
    %v199 = vld [vmem:[#allocation7 + $0x4] sm:$0xf]
    %v200 = vld [vmem:[#allocation7 + $0x8] sm:$0xf]
    %v201 = vld [vmem:[#allocation7 + $0xc] sm:$0xf]
    %v202 = vld [vmem:[%s4] sm:$0x1]
    %v203 = vpack.c.bf16 %v197, %v196
    %v205 = vlaneseq
    %v206 = vshrl.u32 %v205, 7
    %v207 = vsub.s32 0, %v206
    %v208 = vrot.slane %v202, %v207
    %v214 = vunpack.c.l.b16 %v198
    %v215 = vunpack.c.l.b16 %v199
    %v216 = vunpack.c.l.b16 %v200
    %v217 = vunpack.c.l.b16 %v201
    %v218 = vpack.c.b16 %v215, %v214
    %v219 = vpack.c.b16 %v217, %v216
    %vm222 = vcmask 261120
    %v224 = vsel %vm222, %v203, 0
    %226 = vmatprep.subr.bf16.mxu0 0
    %227 = vmatpush1.bf16.msra.mxu0 %v218
    %228 = vmatprep.subr.bf16.mxu0 0
    %229 = vmatpush1.bf16.msra.mxu0 %v219
    %230 = vmatprep.subr.bf16.mxu0 0
    %231 = vmatpush1.bf16.msra.mxu0 0
    %232 = vmatprep.subr.bf16.mxu0 0
    %233 = vmatpush1.bf16.msra.mxu0 0
    %234 = vmatprep.subr.bf16.mxu0 0
    %235 = vmatpush1.bf16.msra.mxu0 0
    %236 = vmatprep.subr.bf16.mxu0 0
    %237 = vmatpush1.bf16.msra.mxu0 0
    %238 = vmatprep.subr.bf16.mxu0 0
    %239 = vmatpush1.bf16.msra.mxu0 0
    %240 = vmatprep.subr.bf16.mxu0 0
    %241 = vmatpush1.bf16.msra.mxu0 0
    %242 = vmatprep.subr.bf16.mxu0 0
    %243 = vmatpush1.bf16.msra.mxu0 0
    %244 = vmatprep.subr.bf16.mxu0 0
    %245 = vmatpush1.bf16.msra.mxu0 0
    %246 = vmatprep.subr.bf16.mxu0 0
    %247 = vmatpush1.bf16.msra.mxu0 0
    %248 = vmatprep.subr.bf16.mxu0 0
    %249 = vmatpush1.bf16.msra.mxu0 0
    %250 = vmatprep.subr.bf16.mxu0 0
    %251 = vmatpush1.bf16.msra.mxu0 0
    %252 = vmatprep.subr.bf16.mxu0 0
    %253 = vmatpush1.bf16.msra.mxu0 0
    %254 = vmatprep.subr.bf16.mxu0 0
    %255 = vmatpush1.bf16.msra.mxu0 0
    %256 = vmatprep.subr.bf16.mxu0 0
    %257 = vmatpush1.bf16.msra.mxu0 0
    %258 = vmatprep.mubr.bf16.mxu0 0
    %259 = vmatmul.mubr.bf16.gmra.mrb[0].mxu0 %v224
    %v260 = vpop.f32.mrb[0].mxu0
    %v261 = vadd.f32 %v208, %v260
    %v262 = vpop.f32.mrb[0].mxu0
    %v263 = vpop.f32.mrb[0].mxu0
    %v264 = vadd.f32 %v208, %v263
    %v265 = vpop.f32.mrb[0].mxu0
    %266 = vdwg.mxu0
    %v267 = vmax.f32 %v261, 0.0
    %v268 = vmax.f32 %v264, 0.0
    %v269 = vld [vmem:[#allocation8] sm:$0xf]
    %v270 = vld [vmem:[#allocation8 + $0x4] sm:$0xf]
    %v271 = vld [vmem:[#allocation8 + $0x8] sm:$0xf]
    %v272 = vld [vmem:[#allocation8 + $0xc] sm:$0xf]
    %v273 = vld [vmem:[#allocation8 + $0x10] sm:$0xf]
    %v274 = vld [vmem:[#allocation8 + $0x14] sm:$0xf]
    %v275 = vld [vmem:[#allocation8 + $0x18] sm:$0xf]
    %v276 = vld [vmem:[#allocation8 + $0x1c] sm:$0xf]
    %v277 = vld [vmem:[%s6] sm:$0x1]
    %v278 = vpack.c.bf16 %v268, %v267
    %v280 = vlaneseq
    %v281 = vshrl.u32 %v280, 7
    %v282 = vsub.s32 0, %v281
    %v283 = vrot.slane %v277, %v282
    %v293 = vunpack.c.l.b16 %v269
    %v294 = vunpack.c.l.b16 %v270
    %v295 = vunpack.c.l.b16 %v271
    %v296 = vunpack.c.l.b16 %v272
    %v297 = vunpack.c.l.b16 %v273
    %v298 = vunpack.c.l.b16 %v274
    %v299 = vunpack.c.l.b16 %v275
    %v300 = vunpack.c.l.b16 %v276
    %v301 = vpack.c.b16 %v294, %v293
    %v302 = vpack.c.b16 %v296, %v295
    %v303 = vpack.c.b16 %v298, %v297
    %v304 = vpack.c.b16 %v300, %v299
    %vm309 = vcmask 523264
    %v311 = vsel %vm309, %v278, 0
    %313 = vmatprep.subr.bf16.mxu0 0
    %314 = vmatpush1.bf16.msra.mxu0 %v301
    %315 = vmatprep.subr.bf16.mxu0 0
    %316 = vmatpush1.bf16.msra.mxu0 %v302
    %317 = vmatprep.subr.bf16.mxu0 0
    %318 = vmatpush1.bf16.msra.mxu0 %v303
    %319 = vmatprep.subr.bf16.mxu0 0
    %320 = vmatpush1.bf16.msra.mxu0 %v304
    %321 = vmatprep.subr.bf16.mxu0 0
    %322 = vmatpush1.bf16.msra.mxu0 0
    %323 = vmatprep.subr.bf16.mxu0 0
    %324 = vmatpush1.bf16.msra.mxu0 0
    %325 = vmatprep.subr.bf16.mxu0 0
    %326 = vmatpush1.bf16.msra.mxu0 0
    %327 = vmatprep.subr.bf16.mxu0 0
    %328 = vmatpush1.bf16.msra.mxu0 0
    %329 = vmatprep.subr.bf16.mxu0 0
    %330 = vmatpush1.bf16.msra.mxu0 0
    %331 = vmatprep.subr.bf16.mxu0 0
    %332 = vmatpush1.bf16.msra.mxu0 0
    %333 = vmatprep.subr.bf16.mxu0 0
    %334 = vmatpush1.bf16.msra.mxu0 0
    %335 = vmatprep.subr.bf16.mxu0 0
    %336 = vmatpush1.bf16.msra.mxu0 0
    %337 = vmatprep.subr.bf16.mxu0 0
    %338 = vmatpush1.bf16.msra.mxu0 0
    %339 = vmatprep.subr.bf16.mxu0 0
    %340 = vmatpush1.bf16.msra.mxu0 0
    %341 = vmatprep.subr.bf16.mxu0 0
    %342 = vmatpush1.bf16.msra.mxu0 0
    %343 = vmatprep.subr.bf16.mxu0 0
    %344 = vmatpush1.bf16.msra.mxu0 0
    %345 = vmatprep.mubr.bf16.mxu0 0
    %346 = vmatmul.mubr.bf16.gmra.mrb[0].mxu0 %v311
    %v347 = vpop.f32.mrb[0].mxu0
    %v348 = vadd.f32 %v283, %v347
    %v349 = vpop.f32.mrb[0].mxu0
    %v350 = vpop.f32.mrb[0].mxu0
    %v351 = vadd.f32 %v283, %v350
    %v352 = vpop.f32.mrb[0].mxu0
    %353 = vdwg.mxu0
    %v354 = vmax.f32 %v348, 0.0
    %v355 = vmax.f32 %v351, 0.0
    %v356 = vld [vmem:[#allocation10] sm:$0xf]
    %v357 = vld [vmem:[#allocation10 + $0x4] sm:$0xf]
    %v358 = vld [vmem:[#allocation10 + $0x8] sm:$0xf]
    %v359 = vld [vmem:[#allocation10 + $0xc] sm:$0xf]
    %v360 = vld [vmem:[#allocation10 + $0x10] sm:$0xf]
    %v361 = vld [vmem:[#allocation10 + $0x14] sm:$0xf]
    %v362 = vld [vmem:[#allocation10 + $0x18] sm:$0xf]
    %v363 = vld [vmem:[#allocation10 + $0x1c] sm:$0xf]
    %v364 = vld [vmem:[%s8] sm:$0x1]
    %v365 = vpack.c.bf16 %v355, %v354
    %v367 = vlaneseq
    %v368 = vshrl.u32 %v367, 7
    %v369 = vsub.s32 0, %v368
    %v370 = vrot.slane %v364, %v369
    %v380 = vunpack.c.l.b16 %v356
    %v381 = vunpack.c.l.b16 %v357
    %v382 = vunpack.c.l.b16 %v358
    %v383 = vunpack.c.l.b16 %v359
    %v384 = vunpack.c.l.b16 %v360
    %v385 = vunpack.c.l.b16 %v361
    %v386 = vunpack.c.l.b16 %v362
    %v387 = vunpack.c.l.b16 %v363
    %v388 = vpack.c.b16 %v381, %v380
    %v389 = vpack.c.b16 %v383, %v382
    %v390 = vpack.c.b16 %v385, %v384
    %v391 = vpack.c.b16 %v387, %v386
    %v397 = vsel %vm309, %v365, 0
    %399 = vmatprep.subr.bf16.mxu0 0
    %400 = vmatpush1.bf16.msra.mxu0 %v388
    %401 = vmatprep.subr.bf16.mxu0 0
    %402 = vmatpush1.bf16.msra.mxu0 %v389
    %403 = vmatprep.subr.bf16.mxu0 0
    %404 = vmatpush1.bf16.msra.mxu0 %v390
    %405 = vmatprep.subr.bf16.mxu0 0
    %406 = vmatpush1.bf16.msra.mxu0 %v391
    %407 = vmatprep.subr.bf16.mxu0 0
    %408 = vmatpush1.bf16.msra.mxu0 0
    %409 = vmatprep.subr.bf16.mxu0 0
    %410 = vmatpush1.bf16.msra.mxu0 0
    %411 = vmatprep.subr.bf16.mxu0 0
    %412 = vmatpush1.bf16.msra.mxu0 0
    %413 = vmatprep.subr.bf16.mxu0 0
    %414 = vmatpush1.bf16.msra.mxu0 0
    %415 = vmatprep.subr.bf16.mxu0 0
    %416 = vmatpush1.bf16.msra.mxu0 0
    %417 = vmatprep.subr.bf16.mxu0 0
    %418 = vmatpush1.bf16.msra.mxu0 0
    %419 = vmatprep.subr.bf16.mxu0 0
    %420 = vmatpush1.bf16.msra.mxu0 0
    %421 = vmatprep.subr.bf16.mxu0 0
    %422 = vmatpush1.bf16.msra.mxu0 0
    %423 = vmatprep.subr.bf16.mxu0 0
    %424 = vmatpush1.bf16.msra.mxu0 0
    %425 = vmatprep.subr.bf16.mxu0 0
    %426 = vmatpush1.bf16.msra.mxu0 0
    %427 = vmatprep.subr.bf16.mxu0 0
    %428 = vmatpush1.bf16.msra.mxu0 0
    %429 = vmatprep.subr.bf16.mxu0 0
    %430 = vmatpush1.bf16.msra.mxu0 0
    %431 = vmatprep.mubr.bf16.mxu0 0
    %432 = vmatmul.mubr.bf16.gmra.mrb[0].mxu0 %v397
    %v433 = vpop.f32.mrb[0].mxu0
    %v434 = vadd.f32 %v370, %v433
    %v435 = vpop.f32.mrb[0].mxu0
    %v436 = vpop.f32.mrb[0].mxu0
    %v437 = vadd.f32 %v370, %v436
    %v438 = vpop.f32.mrb[0].mxu0
    %439 = vdwg.mxu0
    %v440 = vmax.f32 %v434, 0.0
    %v441 = vmax.f32 %v437, 0.0
    %v442 = vld [vmem:[#allocation11] sm:$0xff]
    %v443 = vld [vmem:[#allocation11 + $0x8] sm:$0xff]
    %v444 = vld [vmem:[#allocation11 + $0x10] sm:$0xff]
    %v445 = vld [vmem:[#allocation11 + $0x18] sm:$0xff]
    %v446 = vld [vmem:[#allocation11 + $0x20] sm:$0xff]
    %v447 = vld [vmem:[#allocation11 + $0x28] sm:$0xff]
    %v448 = vld [vmem:[#allocation11 + $0x30] sm:$0xff]
    %v449 = vld [vmem:[#allocation11 + $0x38] sm:$0xff]
    %v450 = vld [vmem:[#allocation11 + $0x40] sm:$0xff]
    %v451 = vld [vmem:[#allocation11 + $0x48] sm:$0xff]
    %v452 = vld [vmem:[#allocation11 + $0x50] sm:$0xff]
    %v453 = vld [vmem:[#allocation11 + $0x58] sm:$0xff]
    %v454 = vld [vmem:[#allocation11 + $0x60] sm:$0xff]
    %v455 = vld [vmem:[#allocation11 + $0x68] sm:$0xff]
    %v456 = vld [vmem:[#allocation11 + $0x70] sm:$0xff]
    %v457 = vld [vmem:[#allocation11 + $0x78] sm:$0xff]
    %v458 = vld [vmem:[#allocation11 + $0x80] sm:$0xff]
    %v459 = vld [vmem:[#allocation11 + $0x88] sm:$0xff]
    %v460 = vld [vmem:[#allocation11 + $0x90] sm:$0xff]
    %v461 = vld [vmem:[#allocation11 + $0x98] sm:$0xff]
    %v462 = vld [vmem:[#allocation11 + $0xa0] sm:$0xff]
    %v463 = vld [vmem:[#allocation11 + $0xa8] sm:$0xff]
    %v464 = vld [vmem:[#allocation11 + $0xb0] sm:$0xff]
    %v465 = vld [vmem:[#allocation11 + $0xb8] sm:$0xff]
    %v466 = vld [vmem:[#allocation11 + $0xc0] sm:$0xff]
    %v467 = vld [vmem:[#allocation11 + $0xc8] sm:$0xff]
    %v468 = vld [vmem:[#allocation11 + $0xd0] sm:$0xff]
    %v469 = vld [vmem:[#allocation11 + $0xd8] sm:$0xff]
    %v470 = vld [vmem:[#allocation11 + $0xe0] sm:$0xff]
    %v471 = vld [vmem:[#allocation11 + $0xe8] sm:$0xff]
    %v472 = vld [vmem:[#allocation11 + $0xf0] sm:$0xff]
    %v473 = vld [vmem:[#allocation11 + $0xf8] sm:$0xff]
    %v474 = vld [vmem:[%s10] sm:$0xff]
    %v475 = vpack.c.bf16 %v441, %v440
    %v477 = vlaneseq
    %v478 = vshrl.u32 %v477, 7
    %v479 = vsub.s32 0, %v478
    %v480 = vrot.slane %v474, %v479
    %v481 = vlaneseq
    %v482 = vshrl.u32 %v481, 7
    %v483 = vsub.s32 1, %v482
    %v484 = vrot.slane %v474, %v483
    %v485 = vlaneseq
    %v486 = vshrl.u32 %v485, 7
    %v487 = vsub.s32 2, %v486
    %v488 = vrot.slane %v474, %v487
    %v489 = vlaneseq
    %v490 = vshrl.u32 %v489, 7
    %v491 = vsub.s32 3, %v490
    %v492 = vrot.slane %v474, %v491
    %v493 = vlaneseq
    %v494 = vshrl.u32 %v493, 7
    %v495 = vsub.s32 4, %v494
    %v496 = vrot.slane %v474, %v495
    %v497 = vlaneseq
    %v498 = vshrl.u32 %v497, 7
    %v499 = vsub.s32 5, %v498
    %v500 = vrot.slane %v474, %v499
    %v501 = vlaneseq
    %v502 = vshrl.u32 %v501, 7
    %v503 = vsub.s32 6, %v502
    %v504 = vrot.slane %v474, %v503
    %v505 = vlaneseq
    %v506 = vshrl.u32 %v505, 7
    %v507 = vsub.s32 7, %v506
    %v508 = vrot.slane %v474, %v507
    %v549 = vunpack.c.l.b16 %v442
    %v550 = vunpack.c.h.b16 %v442
    %v551 = vunpack.c.l.b16 %v443
    %v552 = vunpack.c.h.b16 %v443
    %v553 = vunpack.c.l.b16 %v444
    %v554 = vunpack.c.h.b16 %v444
    %v555 = vunpack.c.l.b16 %v445
    %v556 = vunpack.c.h.b16 %v445
    %v557 = vunpack.c.l.b16 %v446
    %v558 = vunpack.c.h.b16 %v446
    %v559 = vunpack.c.l.b16 %v447
    %v560 = vunpack.c.h.b16 %v447
    %v561 = vunpack.c.l.b16 %v448
    %v562 = vunpack.c.h.b16 %v448
    %v563 = vunpack.c.l.b16 %v449
    %v564 = vunpack.c.h.b16 %v449
    %v565 = vunpack.c.l.b16 %v450
    %v566 = vunpack.c.h.b16 %v450
    %v567 = vunpack.c.l.b16 %v451
    %v568 = vunpack.c.h.b16 %v451
    %v569 = vunpack.c.l.b16 %v452
    %v570 = vunpack.c.h.b16 %v452
    %v571 = vunpack.c.l.b16 %v453
    %v572 = vunpack.c.h.b16 %v453
    %v573 = vunpack.c.l.b16 %v454
    %v574 = vunpack.c.h.b16 %v454
    %v575 = vunpack.c.l.b16 %v455
    %v576 = vunpack.c.h.b16 %v455
    %v577 = vunpack.c.l.b16 %v456
    %v578 = vunpack.c.h.b16 %v456
    %v579 = vunpack.c.l.b16 %v457
    %v580 = vunpack.c.h.b16 %v457
    %v581 = vunpack.c.l.b16 %v458
    %v582 = vunpack.c.h.b16 %v458
    %v583 = vunpack.c.l.b16 %v459
    %v584 = vunpack.c.h.b16 %v459
    %v585 = vunpack.c.l.b16 %v460
    %v586 = vunpack.c.h.b16 %v460
    %v587 = vunpack.c.l.b16 %v461
    %v588 = vunpack.c.h.b16 %v461
    %v589 = vunpack.c.l.b16 %v462
    %v590 = vunpack.c.h.b16 %v462
    %v591 = vunpack.c.l.b16 %v463
    %v592 = vunpack.c.h.b16 %v463
    %v593 = vunpack.c.l.b16 %v464
    %v594 = vunpack.c.h.b16 %v464
    %v595 = vunpack.c.l.b16 %v465
    %v596 = vunpack.c.h.b16 %v465
    %v597 = vunpack.c.l.b16 %v466
    %v598 = vunpack.c.h.b16 %v466
    %v599 = vunpack.c.l.b16 %v467
    %v600 = vunpack.c.h.b16 %v467
    %v601 = vunpack.c.l.b16 %v468
    %v602 = vunpack.c.h.b16 %v468
    %v603 = vunpack.c.l.b16 %v469
    %v604 = vunpack.c.h.b16 %v469
    %v605 = vunpack.c.l.b16 %v470
    %v606 = vunpack.c.h.b16 %v470
    %v607 = vunpack.c.l.b16 %v471
    %v608 = vunpack.c.h.b16 %v471
    %v609 = vunpack.c.l.b16 %v472
    %v610 = vunpack.c.h.b16 %v472
    %v611 = vunpack.c.l.b16 %v473
    %v612 = vunpack.c.h.b16 %v473
    %v613 = vpack.c.b16 %v557, %v549
    %v614 = vpack.c.b16 %v558, %v550
    %v615 = vpack.c.b16 %v559, %v551
    %v616 = vpack.c.b16 %v560, %v552
    %v617 = vpack.c.b16 %v561, %v553
    %v618 = vpack.c.b16 %v562, %v554
    %v619 = vpack.c.b16 %v563, %v555
    %v620 = vpack.c.b16 %v564, %v556
    %v621 = vpack.c.b16 %v573, %v565
    %v622 = vpack.c.b16 %v574, %v566
    %v623 = vpack.c.b16 %v575, %v567
    %v624 = vpack.c.b16 %v576, %v568
    %v625 = vpack.c.b16 %v577, %v569
    %v626 = vpack.c.b16 %v578, %v570
    %v627 = vpack.c.b16 %v579, %v571
    %v628 = vpack.c.b16 %v580, %v572
    %v629 = vpack.c.b16 %v589, %v581
    %v630 = vpack.c.b16 %v590, %v582
    %v631 = vpack.c.b16 %v591, %v583
    %v632 = vpack.c.b16 %v592, %v584
    %v633 = vpack.c.b16 %v593, %v585
    %v634 = vpack.c.b16 %v594, %v586
    %v635 = vpack.c.b16 %v595, %v587
    %v636 = vpack.c.b16 %v596, %v588
    %v637 = vpack.c.b16 %v605, %v597
    %v638 = vpack.c.b16 %v606, %v598
    %v639 = vpack.c.b16 %v607, %v599
    %v640 = vpack.c.b16 %v608, %v600
    %v641 = vpack.c.b16 %v609, %v601
    %v642 = vpack.c.b16 %v610, %v602
    %v643 = vpack.c.b16 %v611, %v603
    %v644 = vpack.c.b16 %v612, %v604
    %v678 = vsel %vm309, %v475, 0
    %680 = vmatprep.subr.bf16.mxu0 %v614
    %681 = vmatpush1.bf16.msra.mxu0 %v613
    %682 = vmatprep.subr.bf16.mxu0 %v622
    %683 = vmatpush1.bf16.msra.mxu0 %v621
    %684 = vmatprep.subr.bf16.mxu0 %v630
    %685 = vmatpush1.bf16.msra.mxu0 %v629
    %686 = vmatprep.subr.bf16.mxu0 %v638
    %687 = vmatpush1.bf16.msra.mxu0 %v637
    %688 = vmatprep.subr.bf16.mxu0 0
    %689 = vmatpush1.bf16.msra.mxu0 0
    %690 = vmatprep.subr.bf16.mxu0 0
    %691 = vmatpush1.bf16.msra.mxu0 0
    %692 = vmatprep.subr.bf16.mxu0 0
    %693 = vmatpush1.bf16.msra.mxu0 0
    %694 = vmatprep.subr.bf16.mxu0 0
    %695 = vmatpush1.bf16.msra.mxu0 0
    %696 = vmatprep.subr.bf16.mxu0 0
    %697 = vmatpush1.bf16.msra.mxu0 0
    %698 = vmatprep.subr.bf16.mxu0 0
    %699 = vmatpush1.bf16.msra.mxu0 0
    %700 = vmatprep.subr.bf16.mxu0 0
    %701 = vmatpush1.bf16.msra.mxu0 0
    %702 = vmatprep.subr.bf16.mxu0 0
    %703 = vmatpush1.bf16.msra.mxu0 0
    %704 = vmatprep.subr.bf16.mxu0 0
    %705 = vmatpush1.bf16.msra.mxu0 0
    %706 = vmatprep.subr.bf16.mxu0 0
    %707 = vmatpush1.bf16.msra.mxu0 0
    %708 = vmatprep.subr.bf16.mxu0 0
    %709 = vmatpush1.bf16.msra.mxu0 0
    %710 = vmatprep.subr.bf16.mxu0 0
    %711 = vmatpush1.bf16.msra.mxu0 0
    %712 = vmatprep.mubr.bf16.mxu0 0
    %713 = vmatmul.mubr.bf16.gmra.mrb[0].mxu0 %v678
    %v714 = vpop.f32.mrb[0].mxu0
    %v715 = vadd.f32 %v480, %v714
    %v716 = vpop.f32.mrb[0].mxu0
    %v717 = vadd.f32 %v484, %v716
    %v718 = vpop.f32.mrb[0].mxu0
    %v719 = vadd.f32 %v480, %v718
    %v720 = vpop.f32.mrb[0].mxu0
    %v721 = vadd.f32 %v484, %v720
    %722 = vdwg.mxu0
    %723 = vmatprep.subr.bf16.mxu0 %v616
    %724 = vmatpush1.bf16.msra.mxu0 %v615
    %725 = vmatprep.subr.bf16.mxu0 %v624
    %726 = vmatpush1.bf16.msra.mxu0 %v623
    %727 = vmatprep.subr.bf16.mxu0 %v632
    %728 = vmatpush1.bf16.msra.mxu0 %v631
    %729 = vmatprep.subr.bf16.mxu0 %v640
    %730 = vmatpush1.bf16.msra.mxu0 %v639
    %731 = vmatprep.subr.bf16.mxu0 0
    %732 = vmatpush1.bf16.msra.mxu0 0
    %733 = vmatprep.subr.bf16.mxu0 0
    %734 = vmatpush1.bf16.msra.mxu0 0
    %735 = vmatprep.subr.bf16.mxu0 0
    %736 = vmatpush1.bf16.msra.mxu0 0
    %737 = vmatprep.subr.bf16.mxu0 0
    %738 = vmatpush1.bf16.msra.mxu0 0
    %739 = vmatprep.subr.bf16.mxu0 0
    %740 = vmatpush1.bf16.msra.mxu0 0
    %741 = vmatprep.subr.bf16.mxu0 0
    %742 = vmatpush1.bf16.msra.mxu0 0
    %743 = vmatprep.subr.bf16.mxu0 0
    %744 = vmatpush1.bf16.msra.mxu0 0
    %745 = vmatprep.subr.bf16.mxu0 0
    %746 = vmatpush1.bf16.msra.mxu0 0
    %747 = vmatprep.subr.bf16.mxu0 0
    %748 = vmatpush1.bf16.msra.mxu0 0
    %749 = vmatprep.subr.bf16.mxu0 0
    %750 = vmatpush1.bf16.msra.mxu0 0
    %751 = vmatprep.subr.bf16.mxu0 0
    %752 = vmatpush1.bf16.msra.mxu0 0
    %753 = vmatprep.subr.bf16.mxu0 0
    %754 = vmatpush1.bf16.msra.mxu0 0
    %755 = vmatprep.mubr.bf16.mxu0 0
    %756 = vmatmul.mubr.bf16.gmra.mrb[0].mxu0 %v678
    %v757 = vpop.f32.mrb[0].mxu0
    %v758 = vadd.f32 %v488, %v757
    %v759 = vpop.f32.mrb[0].mxu0
    %v760 = vadd.f32 %v492, %v759
    %v761 = vpop.f32.mrb[0].mxu0
    %v762 = vadd.f32 %v488, %v761
    %v763 = vpop.f32.mrb[0].mxu0
    %v764 = vadd.f32 %v492, %v763
    %765 = vdwg.mxu0
    %766 = vmatprep.subr.bf16.mxu0 %v618
    %767 = vmatpush1.bf16.msra.mxu0 %v617
    %768 = vmatprep.subr.bf16.mxu0 %v626
    %769 = vmatpush1.bf16.msra.mxu0 %v625
    %770 = vmatprep.subr.bf16.mxu0 %v634
    %771 = vmatpush1.bf16.msra.mxu0 %v633
    %772 = vmatprep.subr.bf16.mxu0 %v642
    %773 = vmatpush1.bf16.msra.mxu0 %v641
    %774 = vmatprep.subr.bf16.mxu0 0
    %775 = vmatpush1.bf16.msra.mxu0 0
    %776 = vmatprep.subr.bf16.mxu0 0
    %777 = vmatpush1.bf16.msra.mxu0 0
    %778 = vmatprep.subr.bf16.mxu0 0
    %779 = vmatpush1.bf16.msra.mxu0 0
    %780 = vmatprep.subr.bf16.mxu0 0
    %781 = vmatpush1.bf16.msra.mxu0 0
    %782 = vmatprep.subr.bf16.mxu0 0
    %783 = vmatpush1.bf16.msra.mxu0 0
    %784 = vmatprep.subr.bf16.mxu0 0
    %785 = vmatpush1.bf16.msra.mxu0 0
    %786 = vmatprep.subr.bf16.mxu0 0
    %787 = vmatpush1.bf16.msra.mxu0 0
    %788 = vmatprep.subr.bf16.mxu0 0
    %789 = vmatpush1.bf16.msra.mxu0 0
    %790 = vmatprep.subr.bf16.mxu0 0
    %791 = vmatpush1.bf16.msra.mxu0 0
    %792 = vmatprep.subr.bf16.mxu0 0
    %793 = vmatpush1.bf16.msra.mxu0 0
    %794 = vmatprep.subr.bf16.mxu0 0
    %795 = vmatpush1.bf16.msra.mxu0 0
    %796 = vmatprep.subr.bf16.mxu0 0
    %797 = vmatpush1.bf16.msra.mxu0 0
    %798 = vmatprep.mubr.bf16.mxu0 0
    %799 = vmatmul.mubr.bf16.gmra.mrb[0].mxu0 %v678
    %v800 = vpop.f32.mrb[0].mxu0
    %v801 = vadd.f32 %v496, %v800
    %v802 = vpop.f32.mrb[0].mxu0
    %v803 = vadd.f32 %v500, %v802
    %v804 = vpop.f32.mrb[0].mxu0
    %v805 = vadd.f32 %v496, %v804
    %v806 = vpop.f32.mrb[0].mxu0
    %v807 = vadd.f32 %v500, %v806
    %808 = vdwg.mxu0
    %809 = vmatprep.subr.bf16.mxu0 %v620
    %810 = vmatpush1.bf16.msra.mxu0 %v619
    %811 = vmatprep.subr.bf16.mxu0 %v628
    %812 = vmatpush1.bf16.msra.mxu0 %v627
    %813 = vmatprep.subr.bf16.mxu0 %v636
    %814 = vmatpush1.bf16.msra.mxu0 %v635
    %815 = vmatprep.subr.bf16.mxu0 %v644
    %816 = vmatpush1.bf16.msra.mxu0 %v643
    %817 = vmatprep.subr.bf16.mxu0 0
    %818 = vmatpush1.bf16.msra.mxu0 0
    %819 = vmatprep.subr.bf16.mxu0 0
    %820 = vmatpush1.bf16.msra.mxu0 0
    %821 = vmatprep.subr.bf16.mxu0 0
    %822 = vmatpush1.bf16.msra.mxu0 0
    %823 = vmatprep.subr.bf16.mxu0 0
    %824 = vmatpush1.bf16.msra.mxu0 0
    %825 = vmatprep.subr.bf16.mxu0 0
    %826 = vmatpush1.bf16.msra.mxu0 0
    %827 = vmatprep.subr.bf16.mxu0 0
    %828 = vmatpush1.bf16.msra.mxu0 0
    %829 = vmatprep.subr.bf16.mxu0 0
    %830 = vmatpush1.bf16.msra.mxu0 0
    %831 = vmatprep.subr.bf16.mxu0 0
    %832 = vmatpush1.bf16.msra.mxu0 0
    %833 = vmatprep.subr.bf16.mxu0 0
    %834 = vmatpush1.bf16.msra.mxu0 0
    %835 = vmatprep.subr.bf16.mxu0 0
    %836 = vmatpush1.bf16.msra.mxu0 0
    %837 = vmatprep.subr.bf16.mxu0 0
    %838 = vmatpush1.bf16.msra.mxu0 0
    %839 = vmatprep.subr.bf16.mxu0 0
    %840 = vmatpush1.bf16.msra.mxu0 0
    %841 = vmatprep.mubr.bf16.mxu0 0
    %842 = vmatmul.mubr.bf16.gmra.mrb[0].mxu0 %v678
    %v843 = vpop.f32.mrb[0].mxu0
    %v844 = vadd.f32 %v504, %v843
    %v845 = vpop.f32.mrb[0].mxu0
    %v846 = vadd.f32 %v508, %v845
    %v847 = vpop.f32.mrb[0].mxu0
    %v848 = vadd.f32 %v504, %v847
    %v849 = vpop.f32.mrb[0].mxu0
    %v850 = vadd.f32 %v508, %v849
    %851 = vdwg.mxu0
    %852 = vst [vmem:[#allocation13] sm:$0xff] %v715
    %853 = vst [vmem:[#allocation13 + $0x8] sm:$0xff] %v717
    %854 = vst [vmem:[#allocation13 + $0x10] sm:$0xff] %v758
    %855 = vst [vmem:[#allocation13 + $0x18] sm:$0xff] %v760
    %856 = vst [vmem:[#allocation13 + $0x20] sm:$0xff] %v801
    %857 = vst [vmem:[#allocation13 + $0x28] sm:$0xff] %v803
    %858 = vst [vmem:[#allocation13 + $0x30] sm:$0xff] %v844
    %859 = vst [vmem:[#allocation13 + $0x38] sm:$0xff] %v846
    %860 = vst [vmem:[#allocation13 + $0x40] sm:$0xff] %v719
    %861 = vst [vmem:[#allocation13 + $0x48] sm:$0xff] %v721
    %862 = vst [vmem:[#allocation13 + $0x50] sm:$0xff] %v762
    %863 = vst [vmem:[#allocation13 + $0x58] sm:$0xff] %v764
    %864 = vst [vmem:[#allocation13 + $0x60] sm:$0xff] %v805
    %865 = vst [vmem:[#allocation13 + $0x68] sm:$0xff] %v807
    %866 = vst [vmem:[#allocation13 + $0x70] sm:$0xff] %v848
    %867 = vst [vmem:[#allocation13 + $0x78] sm:$0xff] %v850
    // Predicated region
    $region70: #{tpu_custom_call.1} parent=1 // pred_check
      _
    $region71: #{tpu_custom_call.1} parent=1 // pred_check_branch
      %869 = sbr.rel (0) target = $region73
    $region72: #{tpu_custom_call.1} parent=1 // pred_region
      %s871 = ssub.s32 2048, 2048
      %872 = vsyncadd [#allocation4], %s871
      %s873 = sshll.u32 [#allocation13], 4
      %s874 = int_to_ptr.vmem [resolvable:$true] %s873
      %879 = dma.vmem_to_hbm [thread:$0]  %s874, 2048, %s11, [#allocation4], 1024, 1024, 64
    $region73: #{tpu_custom_call.1} parent=1 // pred_fallthru
      _
    // Predicated region
    $region74: #{tpu_custom_call.1} parent=1 // pred_check
      _
    $region75: #{tpu_custom_call.1} parent=1 // pred_check_branch
      %881 = sbr.rel (0) target = $region77
    $region76: #{tpu_custom_call.1} parent=1 // pred_region
      %882 = dma.done [#allocation4], 2048
    $region77: #{tpu_custom_call.1} parent=1 // pred_fallthru
      _
    %883 = vsyncpa [#allocation3], 1
    %884 = vsyncpa [#allocation6], 1
    %885 = vsyncpa [#allocation9], 1
    %886 = vsyncpa [#allocation12], 1
    %887 = vsyncpa [#allocation4], 1

</llo_original>
